<compile_context>
chip_gen: v5e
topology: v5e:2x2
jax: 0.10.0
libtpu: 0.0.40
codegen_flags: <defaults>
</compile_context>

<pallas_src>
import math

import jax
import jax.numpy as jnp
from jax.experimental import pallas as pl
from jax.experimental.pallas import tpu as pltpu

_K = 3  # nn.MaxPool2d(kernel_size=3): stride defaults to kernel_size -> 3.


def _pool_out_size(size, kernel=_K, stride=_K):
    out = math.ceil((size - kernel) / stride) + 1
    # PyTorch ceil_mode rule (padding == 0): last window must start inside the input.
    if (out - 1) * stride >= size:
        out -= 1
    return out


def _round_up(v, m):
    return (v + m - 1) // m * m


def _min_value(dtype):
    dtype = jnp.dtype(dtype)
    if dtype == jnp.bool_:
        return jnp.array(False)          # identity for max/OR
    if jnp.issubdtype(dtype, jnp.floating):
        return jnp.array(-jnp.inf, dtype=dtype)
    return jnp.array(jnp.iinfo(dtype).min, dtype=dtype)


def _tensorcores_per_chip():
    """1 for single-core chips (v5e/v6e), 2 for megacore chips (v4/v5p/v7x)."""
    try:
        kind = jax.devices()[0].device_kind.lower()
    except Exception:
        return 2  # conservative: assume megacore so both cores get work
    if any(tag in kind for tag in ("v5e", "v5 lite", "v5litepod", "v6e", "v6 lite")):
        return 1
    return 2


def _vmem_capacity_bytes():
    try:
        return int(pltpu.get_tpu_info().vmem_capacity_bytes)
    except Exception:
        return 64 << 20  # conservative: v7x per-TensorCore VMEM


def _choose_tiling(out_h, w_lanes, itemsize):
    """Pick the out_h row tile TH and a matching vmem_limit_bytes."""
    # VMEM footprint per out_h row, including (sublane, lane) tile padding:
    #   input plane: 9 tap rows -> 16 sublanes; lanes padded to 128.
    in_row = 16 * _round_up(w_lanes, 128) * itemsize
    out_row = 8 * _round_up(w_lanes, 128) * itemsize // 8

    budget = 10 << 20                         # ~10 MiB input block (roofline plateau)
    th = max(1, budget // in_row)

    if _tensorcores_per_chip() > 1:
        # megacore: give each TensorCore at least 2 pipelined grid steps
        th = min(th, pl.cdiv(out_h, 4))

    if th < out_h:
        # output block's second-to-last dim must be a multiple of 8
        th = max(8, th // 8 * 8)

    # keep the double-buffered working set inside per-core VMEM
    allowed = min(int(_vmem_capacity_bytes() * 0.7), 96 << 20)
    while th > 8 and 2 * th * (in_row + out_row) > allowed:
        th = max(8, (th // 2) // 8 * 8)
    th = min(th, out_h)

    need = 2 * th * (in_row + out_row)
    vmem_limit = int(max(32 << 20, min(allowed, need + (8 << 20))))
    return int(th), vmem_limit


def _maxpool_kernel(x_ref, o_ref):
    # x_ref: (TH, 9, WL) — 9 window taps on the sublane axis, WL = out_w*N*C lanes.
    # o_ref: (TH, WL)
    m = x_ref[:, 0, :]
    for d in range(1, _K * _K):
        m = jnp.maximum(m, x_ref[:, d, :])   # pure VPU elementwise max
    o_ref[...] = m


@jax.jit
def maxpool2d_ceil(x):
    """x: (N, C, H, W). Returns nn.MaxPool2d(kernel_size=3, ceil_mode=True)(x)."""
    n, c, h, w = x.shape
    nc = n * c
    out_h = _pool_out_size(h)
    out_w = _pool_out_size(w)
    hp, wp = out_h * _K, out_w * _K
    w_lanes = out_w * nc
    minval = _min_value(x.dtype)

    # ---- single HBM relayout pass: NCHW -> (out_h, 9, out_w*NC) ----
    # pad is only the ceil_mode fringe; reshapes are contiguous splits/merges
    # (free); the one transpose is the unavoidable channels-last relayout and
    # the pad folds into it.
    xp = jnp.pad(x.reshape(nc, h, w), ((0, 0), (0, hp - h), (0, wp - w)),
                 constant_values=minval)
    xw = xp.reshape(nc, out_h, _K, out_w, _K)
    xw = jnp.transpose(xw, (1, 2, 4, 3, 0))          # (out_h, kh, kw, out_w, nc)
    xw = xw.reshape(out_h, _K * _K, w_lanes)         # lane-dense minor dim

    th, vmem_limit = _choose_tiling(out_h, w_lanes, jnp.dtype(x.dtype).itemsize)

    # NOTE: if per-step DMA is still exposed for very short images, sweeping
    # pipeline_mode=pl.Buffered(3) on the input spec is the next knob; the body
    # itself (9 vld / 8 vmax / 1 vst per vreg) is far under the HBM DMA wall.
    out = pl.pallas_call(
        _maxpool_kernel,
        out_shape=jax.ShapeDtypeStruct((out_h, w_lanes), x.dtype),
        grid=(pl.cdiv(out_h, th),),
        in_specs=[pl.BlockSpec((th, _K * _K, w_lanes), lambda i: (i, 0, 0))],
        out_specs=pl.BlockSpec((th, w_lanes), lambda i: (i, 0)),
        compiler_params=pltpu.CompilerParams(
            dimension_semantics=("parallel",),
            vmem_limit_bytes=vmem_limit,
        ),
    )(xw)

    # The module contract returns NCHW, so one small output relayout (~1/9 of
    # the input bytes) is kept deliberately; drop it if the consumer can take
    # channels-last (out_h, out_w, N*C).
    out = out.reshape(out_h, out_w, nc)
    return jnp.transpose(out, (2, 0, 1)).reshape(n, c, out_h, out_w)


if __name__ == "__main__":
    key = jax.random.PRNGKey(0)
    x = jax.random.normal(key, (2, 4, 16, 16), dtype=jnp.float32)

    y = maxpool2d_ceil(x)
    jax.block_until_ready(y)

    # Pure-JAX reference with identical ceil_mode semantics.
    n, c, h, w = x.shape
    oh, ow = _pool_out_size(h), _pool_out_size(w)
    xp = jnp.pad(x, ((0, 0), (0, 0), (0, _K * oh - h), (0, _K * ow - w)),
                 constant_values=-jnp.inf)
    ref = xp.reshape(n, c, oh, _K, ow, _K).max(axis=(3, 5))

    assert y.shape == (2, 4, 6, 6), y.shape
    assert y.dtype == x.dtype
    assert jnp.allclose(y, ref), "mismatch vs reference"
    print("KERNEL_OK")
</pallas_src>

<mosaic_0001>
module attributes {stable_mosaic.version = 11 : i64} {
  func.func @_maxpool_kernel(%arg0: i32, %arg1: memref<6x9x48xf32, #tpu.memory_space<vmem>>, %arg2: memref<6x48xf32, #tpu.memory_space<vmem>>) attributes {dimension_semantics = [#tpu.dimension_semantics<parallel>], iteration_bounds = array<i64: 1>, scalar_prefetch = 0 : i64, scratch_operands = 0 : i64, tpu.core_type = #tpu.core_type<tc>, window_params = [{transform_indices = @transform_0, window_bounds = array<i64: 6, 9, 48>}, {transform_indices = @transform_1, window_bounds = array<i64: 6, 48>}]} {
    %c0 = arith.constant 0 : index
    %c0_0 = arith.constant 0 : index
    %c0_1 = arith.constant 0 : index
    %0 = vector.load %arg1[%c0, %c0_0, %c0_1] : memref<6x9x48xf32, #tpu.memory_space<vmem>>, vector<6x1x48xf32>
    %1 = vector.shape_cast %0 : vector<6x1x48xf32> to vector<6x48xf32>
    %c0_2 = arith.constant 0 : index
    %c1 = arith.constant 1 : index
    %c0_3 = arith.constant 0 : index
    %2 = vector.load %arg1[%c0_2, %c1, %c0_3] : memref<6x9x48xf32, #tpu.memory_space<vmem>>, vector<6x1x48xf32>
    %3 = vector.shape_cast %2 : vector<6x1x48xf32> to vector<6x48xf32>
    %4 = arith.maximumf %1, %3 : vector<6x48xf32>
    %c0_4 = arith.constant 0 : index
    %c2 = arith.constant 2 : index
    %c0_5 = arith.constant 0 : index
    %5 = vector.load %arg1[%c0_4, %c2, %c0_5] : memref<6x9x48xf32, #tpu.memory_space<vmem>>, vector<6x1x48xf32>
    %6 = vector.shape_cast %5 : vector<6x1x48xf32> to vector<6x48xf32>
    %7 = arith.maximumf %4, %6 : vector<6x48xf32>
    %c0_6 = arith.constant 0 : index
    %c3 = arith.constant 3 : index
    %c0_7 = arith.constant 0 : index
    %8 = vector.load %arg1[%c0_6, %c3, %c0_7] : memref<6x9x48xf32, #tpu.memory_space<vmem>>, vector<6x1x48xf32>
    %9 = vector.shape_cast %8 : vector<6x1x48xf32> to vector<6x48xf32>
    %10 = arith.maximumf %7, %9 : vector<6x48xf32>
    %c0_8 = arith.constant 0 : index
    %c4 = arith.constant 4 : index
    %c0_9 = arith.constant 0 : index
    %11 = vector.load %arg1[%c0_8, %c4, %c0_9] : memref<6x9x48xf32, #tpu.memory_space<vmem>>, vector<6x1x48xf32>
    %12 = vector.shape_cast %11 : vector<6x1x48xf32> to vector<6x48xf32>
    %13 = arith.maximumf %10, %12 : vector<6x48xf32>
    %c0_10 = arith.constant 0 : index
    %c5 = arith.constant 5 : index
    %c0_11 = arith.constant 0 : index
    %14 = vector.load %arg1[%c0_10, %c5, %c0_11] : memref<6x9x48xf32, #tpu.memory_space<vmem>>, vector<6x1x48xf32>
    %15 = vector.shape_cast %14 : vector<6x1x48xf32> to vector<6x48xf32>
    %16 = arith.maximumf %13, %15 : vector<6x48xf32>
    %c0_12 = arith.constant 0 : index
    %c6 = arith.constant 6 : index
    %c0_13 = arith.constant 0 : index
    %17 = vector.load %arg1[%c0_12, %c6, %c0_13] : memref<6x9x48xf32, #tpu.memory_space<vmem>>, vector<6x1x48xf32>
    %18 = vector.shape_cast %17 : vector<6x1x48xf32> to vector<6x48xf32>
    %19 = arith.maximumf %16, %18 : vector<6x48xf32>
    %c0_14 = arith.constant 0 : index
    %c7 = arith.constant 7 : index
    %c0_15 = arith.constant 0 : index
    %20 = vector.load %arg1[%c0_14, %c7, %c0_15] : memref<6x9x48xf32, #tpu.memory_space<vmem>>, vector<6x1x48xf32>
    %21 = vector.shape_cast %20 : vector<6x1x48xf32> to vector<6x48xf32>
    %22 = arith.maximumf %19, %21 : vector<6x48xf32>
    %c0_16 = arith.constant 0 : index
    %c8 = arith.constant 8 : index
    %c0_17 = arith.constant 0 : index
    %23 = vector.load %arg1[%c0_16, %c8, %c0_17] : memref<6x9x48xf32, #tpu.memory_space<vmem>>, vector<6x1x48xf32>
    %24 = vector.shape_cast %23 : vector<6x1x48xf32> to vector<6x48xf32>
    %25 = arith.maximumf %22, %24 : vector<6x48xf32>
    %c0_18 = arith.constant 0 : index
    %c0_19 = arith.constant 0 : index
    %26 = vector.load %arg2[%c0_18, %c0_19] : memref<6x48xf32, #tpu.memory_space<vmem>>, vector<6x48xf32>
    tpu.vector_store %arg2[%c0_18, %c0_19], %25 {strides = array<i32>} : memref<6x48xf32, #tpu.memory_space<vmem>>, vector<6x48xf32>,
    return
  }
  func.func @transform_0(%arg0: i32) -> (i32, i32, i32) {
    %c0_i32 = arith.constant 0 : i32
    %c0_i32_0 = arith.constant 0 : i32
    %c0_i32_1 = arith.constant 0 : i32
    return %arg0, %c0_i32, %c0_i32_0 : i32, i32, i32
  }
  func.func @transform_1(%arg0: i32) -> (i32, i32) {
    %c0_i32 = arith.constant 0 : i32
    %c0_i32_0 = arith.constant 0 : i32
    return %arg0, %c0_i32 : i32, i32
  }
}

</mosaic_0001>

<llo_original>
// kernel: maxpool2d_ceil.1
$region0: #{maxpool2d_ceil.1}
  #allocation0 [shape = 'u32[]', space=smem, size = 0x4, offset = 0x4, fixed_abs, tag = 'smem constant byte address 0x4 - core index']
  #allocation1 [shape = 'u32[72,128]{1,0:T(1,128)}', space=vmem, size = 0x9000, scoped, tag = 'internal scratch']
  %s0 = inlined_call_operand.vmem [shape: f32[6,9,48], index: 0, kind: input, shape index: {}]
  %s1 = inlined_call_operand.vmem [shape: f32[6,48], index: 1, kind: output, shape index: {}]
  %s2 = sld [smem:[#allocation0]]
  $region14: #{maxpool2d_ceil.1} parent=0
    _
  %s4 = ssub.s32 1, %s2
  %s5 = scalar_select 0, %s4, %s2
  // Predicated region
  $region2: #{maxpool2d_ceil.1} parent=0 // pred_check
    _
  $region3: #{maxpool2d_ceil.1} parent=0 // pred_check_branch
    %7 = sbr.rel (0) target = $region5
  $region4: #{maxpool2d_ceil.1} parent=0 // pred_region
    _
  $region5: #{maxpool2d_ceil.1} parent=0 // pred_fallthru
    _
  %v8 = vld [vmem:[%s0] sm:$0x1]
  %v9 = vld [vmem:[%s0 + $0x10] sm:$0x1]
  %v10 = vld [vmem:[%s0 + $0x20] sm:$0x1]
  %v11 = vld [vmem:[%s0 + $0x30] sm:$0x1]
  %v12 = vld [vmem:[%s0 + $0x40] sm:$0x1]
  %v13 = vld [vmem:[%s0 + $0x50] sm:$0x1]
  %v14 = vld [vmem:[%s0 + $0x1] sm:$0x1]
  %v15 = vld [vmem:[%s0 + $0x11] sm:$0x1]
  %v16 = vld [vmem:[%s0 + $0x21] sm:$0x1]
  %v17 = vld [vmem:[%s0 + $0x31] sm:$0x1]
  %v18 = vld [vmem:[%s0 + $0x41] sm:$0x1]
  %v19 = vld [vmem:[%s0 + $0x51] sm:$0x1]
  %v20 = vmax.f32 %v8, %v14
  %v21 = vmax.f32 %v9, %v15
  %v22 = vmax.f32 %v10, %v16
  %v23 = vmax.f32 %v11, %v17
  %v24 = vmax.f32 %v12, %v18
  %v25 = vmax.f32 %v13, %v19
  %v26 = vld [vmem:[%s0 + $0x2] sm:$0x1]
  %v27 = vld [vmem:[%s0 + $0x12] sm:$0x1]
  %v28 = vld [vmem:[%s0 + $0x22] sm:$0x1]
  %v29 = vld [vmem:[%s0 + $0x32] sm:$0x1]
  %v30 = vld [vmem:[%s0 + $0x42] sm:$0x1]
  %v31 = vld [vmem:[%s0 + $0x52] sm:$0x1]
  %v32 = vmax.f32 %v20, %v26
  %v33 = vmax.f32 %v21, %v27
  %v34 = vmax.f32 %v22, %v28
  %v35 = vmax.f32 %v23, %v29
  %v36 = vmax.f32 %v24, %v30
  %v37 = vmax.f32 %v25, %v31
  %v38 = vld [vmem:[%s0 + $0x3] sm:$0x1]
  %v39 = vld [vmem:[%s0 + $0x13] sm:$0x1]
  %v40 = vld [vmem:[%s0 + $0x23] sm:$0x1]
  %v41 = vld [vmem:[%s0 + $0x33] sm:$0x1]
  %v42 = vld [vmem:[%s0 + $0x43] sm:$0x1]
  %v43 = vld [vmem:[%s0 + $0x53] sm:$0x1]
  %v44 = vmax.f32 %v32, %v38
  %v45 = vmax.f32 %v33, %v39
  %v46 = vmax.f32 %v34, %v40
  %v47 = vmax.f32 %v35, %v41
  %v48 = vmax.f32 %v36, %v42
  %v49 = vmax.f32 %v37, %v43
  %v50 = vld [vmem:[%s0 + $0x4] sm:$0x1]
  %v51 = vld [vmem:[%s0 + $0x14] sm:$0x1]
  %v52 = vld [vmem:[%s0 + $0x24] sm:$0x1]
  %v53 = vld [vmem:[%s0 + $0x34] sm:$0x1]
  %v54 = vld [vmem:[%s0 + $0x44] sm:$0x1]
  %v55 = vld [vmem:[%s0 + $0x54] sm:$0x1]
  %v56 = vmax.f32 %v44, %v50
  %v57 = vmax.f32 %v45, %v51
  %v58 = vmax.f32 %v46, %v52
  %v59 = vmax.f32 %v47, %v53
  %v60 = vmax.f32 %v48, %v54
  %v61 = vmax.f32 %v49, %v55
  %v62 = vld [vmem:[%s0 + $0x5] sm:$0x1]
  %v63 = vld [vmem:[%s0 + $0x15] sm:$0x1]
  %v64 = vld [vmem:[%s0 + $0x25] sm:$0x1]
  %v65 = vld [vmem:[%s0 + $0x35] sm:$0x1]
  %v66 = vld [vmem:[%s0 + $0x45] sm:$0x1]
  %v67 = vld [vmem:[%s0 + $0x55] sm:$0x1]
  %v68 = vmax.f32 %v56, %v62
  %v69 = vmax.f32 %v57, %v63
  %v70 = vmax.f32 %v58, %v64
  %v71 = vmax.f32 %v59, %v65
  %v72 = vmax.f32 %v60, %v66
  %v73 = vmax.f32 %v61, %v67
  %v74 = vld [vmem:[%s0 + $0x6] sm:$0x1]
  %v75 = vld [vmem:[%s0 + $0x16] sm:$0x1]
  %v76 = vld [vmem:[%s0 + $0x26] sm:$0x1]
  %v77 = vld [vmem:[%s0 + $0x36] sm:$0x1]
  %v78 = vld [vmem:[%s0 + $0x46] sm:$0x1]
  %v79 = vld [vmem:[%s0 + $0x56] sm:$0x1]
  %v80 = vmax.f32 %v68, %v74
  %v81 = vmax.f32 %v69, %v75
  %v82 = vmax.f32 %v70, %v76
  %v83 = vmax.f32 %v71, %v77
  %v84 = vmax.f32 %v72, %v78
  %v85 = vmax.f32 %v73, %v79
  %v86 = vld [vmem:[%s0 + $0x7] sm:$0x1]
  %v87 = vld [vmem:[%s0 + $0x17] sm:$0x1]
  %v88 = vld [vmem:[%s0 + $0x27] sm:$0x1]
  %v89 = vld [vmem:[%s0 + $0x37] sm:$0x1]
  %v90 = vld [vmem:[%s0 + $0x47] sm:$0x1]
  %v91 = vld [vmem:[%s0 + $0x57] sm:$0x1]
  %v92 = vmax.f32 %v80, %v86
  %v93 = vmax.f32 %v81, %v87
  %v94 = vmax.f32 %v82, %v88
  %v95 = vmax.f32 %v83, %v89
  %v96 = vmax.f32 %v84, %v90
  %v97 = vmax.f32 %v85, %v91
  %v98 = vld [vmem:[%s0 + $0x8] sm:$0x1]
  %v99 = vld [vmem:[%s0 + $0x18] sm:$0x1]
  %v100 = vld [vmem:[%s0 + $0x28] sm:$0x1]
  %v101 = vld [vmem:[%s0 + $0x38] sm:$0x1]
  %v102 = vld [vmem:[%s0 + $0x48] sm:$0x1]
  %v103 = vld [vmem:[%s0 + $0x58] sm:$0x1]
  %v104 = vmax.f32 %v92, %v98
  %v105 = vmax.f32 %v93, %v99
  %v106 = vmax.f32 %v94, %v100
  %v107 = vmax.f32 %v95, %v101
  %v108 = vmax.f32 %v96, %v102
  %v109 = vmax.f32 %v97, %v103
  %v116 = vrot.slane %v105, 7
  %vm117 = vcmask 1041409
  %v118 = vsel %vm117, %v116, %v104
  %v119 = vrot.slane %v106, 6
  %vm120 = vcmask 1042434
  %v121 = vsel %vm120, %v119, %v118
  %v122 = vrot.slane %v107, 5
  %vm123 = vcmask 1043459
  %v124 = vsel %vm123, %v122, %v121
  %v125 = vrot.slane %v108, 4
  %vm126 = vcmask 1044484
  %v127 = vsel %vm126, %v125, %v124
  %v128 = vrot.slane %v109, 3
  %vm129 = vcmask 1045509
  %v130 = vsel %vm129, %v128, %v127
  %vm132 = vcmask 390144
  %133 = vst.msk [vmem:[%s1] sm:$0x3f] %vm132, %v130
  // Predicated region
  $region6: #{maxpool2d_ceil.1} parent=0 // pred_check
    _
  $region7: #{maxpool2d_ceil.1} parent=0 // pred_check_branch
    %135 = sbr.rel (0) target = $region9
  $region8: #{maxpool2d_ceil.1} parent=0 // pred_region
    _
  $region9: #{maxpool2d_ceil.1} parent=0 // pred_fallthru
    _
  // Predicated region
  $region10: #{maxpool2d_ceil.1} parent=0 // pred_check
    _
  $region11: #{maxpool2d_ceil.1} parent=0 // pred_check_branch
    %137 = sbr.rel (0) target = $region13
  $region12: #{maxpool2d_ceil.1} parent=0 // pred_region
    _
  $region13: #{maxpool2d_ceil.1} parent=0 // pred_fallthru
    _

</llo_original>
